<compile_context>
chip_gen: v5e
topology: v5e:2x2
jax: 0.10.0
libtpu: 0.0.40
codegen_flags: <defaults>
</compile_context>

<pallas_src>
import math

import jax
import jax.numpy as jnp
from jax import lax
from jax.experimental import pallas as pl
from jax.experimental.pallas import tpu as pltpu

_LANE = 128     # vreg lane width (f32)
_SUBLANE = 8    # vreg sublane count (f32)


def _round_up(n, m):
    return ((n + m - 1) // m) * m


def _device_kind():
    try:
        return jax.devices()[0].device_kind.lower()
    except Exception:
        return ""


def _default_epilogue_dtype():
    # v5e and earlier chips have no bf16 VPU path; keep the f32 epilogue there.
    kind = _device_kind()
    if any(v in kind for v in ("v2", "v3", "v4", "v5")):
        return jnp.float32
    return jnp.bfloat16


def _mlp_kernel(x_ref,
                w1_ref, b1_ref,
                w2_ref, b2_ref,
                w3_ref, b3_ref,
                w4_ref, b4_ref,
                o_ref):
    """Fused 4-layer MLP on one (TB, input_dim) batch tile.

    MXU matmuls in the weight dtype (bf16 by default) with f32 accumulation;
    bias add + ReLU in the bias dtype (bf16 on v6e/v7x, f32 on v5e).
    """
    cdtype = w1_ref.dtype            # MXU input dtype
    tb = x_ref.shape[0]

    # Sub-tile the batch so each layer's activation chunk stays near-resident
    # between layers instead of materializing the full (tb, dh) tile.
    sub = 256
    n_chunks = tb // sub if (tb % sub == 0 and tb > sub) else 1
    chunk = tb // n_chunks

    def layer(h, w_ref, b_ref, relu):
        acc = jnp.dot(h, w_ref[...], preferred_element_type=jnp.float32)
        acc = acc.astype(b_ref.dtype) + b_ref[...]     # epilogue dtype
        if relu:
            acc = jnp.maximum(acc, 0.0)
        return acc

    def body(i, carry):
        r0 = pl.multiple_of(i * chunk, _SUBLANE)
        h = x_ref[pl.ds(r0, chunk), :].astype(cdtype)
        h = layer(h, w1_ref, b1_ref, True).astype(cdtype)
        h = layer(h, w2_ref, b2_ref, True).astype(cdtype)
        h = layer(h, w3_ref, b3_ref, True).astype(cdtype)
        out = layer(h, w4_ref, b4_ref, False)          # fc4: no activation
        o_ref[pl.ds(r0, chunk), :] = out.astype(o_ref.dtype)
        return carry

    lax.fori_loop(0, n_chunks, body, 0, unroll=True)


def prepare_params(params, *, compute_dtype=jnp.bfloat16, epilogue_dtype=None):
    """One-time weight cast + lane padding (hoisted out of the forward path).

    params: dict with w1..w4 of shape (in, out) and b1..b4 of shape (1, out),
            float32 (PyTorch-equivalent values).
    Returns a dict of padded/cast arrays consumable by feedforward_net.
    """
    if epilogue_dtype is None:
        epilogue_dtype = _default_epilogue_dtype()

    input_dim, hidden_dim = params["w1"].shape
    output_dim = params["w4"].shape[1]
    assert params["w2"].shape == (hidden_dim, hidden_dim), params["w2"].shape
    assert params["w3"].shape == (hidden_dim, hidden_dim), params["w3"].shape
    assert params["w4"].shape == (hidden_dim, output_dim), params["w4"].shape
    for name, d in (("b1", hidden_dim), ("b2", hidden_dim),
                    ("b3", hidden_dim), ("b4", output_dim)):
        assert params[name].shape == (1, d), (name, params[name].shape)

    dh_p = _round_up(hidden_dim, _LANE)
    pad_h = dh_p - hidden_dim

    return {
        # w1: K stays at the true input_dim (x is streamed unpadded); only the
        # hidden (lane) dim is zero-padded so intermediate tiles are lane-dense.
        "w1": jnp.pad(params["w1"].astype(compute_dtype), ((0, 0), (0, pad_h))),
        "w2": jnp.pad(params["w2"].astype(compute_dtype), ((0, pad_h), (0, pad_h))),
        "w3": jnp.pad(params["w3"].astype(compute_dtype), ((0, pad_h), (0, pad_h))),
        # w4: padded hidden rows are zeros; output columns stay at the true
        # output_dim (no padded output writeback / post-kernel feature slice).
        "w4": jnp.pad(params["w4"].astype(compute_dtype), ((0, pad_h), (0, 0))),
        "b1": jnp.pad(params["b1"].astype(epilogue_dtype), ((0, 0), (0, pad_h))),
        "b2": jnp.pad(params["b2"].astype(epilogue_dtype), ((0, 0), (0, pad_h))),
        "b3": jnp.pad(params["b3"].astype(epilogue_dtype), ((0, 0), (0, pad_h))),
        "b4": params["b4"].astype(epilogue_dtype),
    }


def feedforward_net(x, prepared, *, block_b=512, single_buffer_weights=True):
    """Run the fused MLP kernel.

    x:        (B, input_dim) float32 activations.
    prepared: output of prepare_params() — weights (in, out) in the compute
              dtype with the hidden dim lane-padded, biases in the epilogue
              dtype.  Zero padding is numerically exact (padded hidden columns
              are ReLU(0)=0 and hit zero weight rows downstream).
    """
    B, input_dim = x.shape
    w1, w2, w3, w4 = prepared["w1"], prepared["w2"], prepared["w3"], prepared["w4"]
    b1, b2, b3, b4 = prepared["b1"], prepared["b2"], prepared["b3"], prepared["b4"]

    if w1.shape[0] != input_dim:
        raise ValueError(f"w1 expects input_dim={w1.shape[0]}, got {input_dim}")

    dh_p = w1.shape[1]
    output_dim = w4.shape[1]

    # Batch tile: multiple of 8 (f32 sublane); aim for >= 2 grid steps so the
    # "parallel" batch axis can shard across v7x's two TensorCores; cap at
    # block_b so the streamed working set stays well inside VMEM.
    tb = max(_SUBLANE, min(block_b, _round_up(pl.cdiv(B, 2), _SUBLANE)))
    b_pad = _round_up(B, tb)
    grid = (b_pad // tb,)

    # Only the batch dim is ever padded, and only when needed; x keeps its true
    # feature width (block last dim == array last dim is legal).
    x_p = x if b_pad == B else jnp.pad(x, ((0, b_pad - B), (0, 0)))

    kind = _device_kind()
    if "v7" in kind or "7x" in kind:
        vmem_limit = 48 << 20            # headroom under v7x's 64 MiB/TC
    elif "v5" in kind or "v6" in kind:
        vmem_limit = 100 << 20           # 128 MiB physical on v5e/v6e
    else:
        vmem_limit = None

    flops = 2 * b_pad * (input_dim * dh_p + 2 * dh_p * dh_p + dh_p * output_dim)
    bytes_accessed = (
        int(x_p.size) * x_p.dtype.itemsize
        + b_pad * output_dim * x.dtype.itemsize
        + sum(int(a.size) * a.dtype.itemsize
              for a in (w1, w2, w3, w4, b1, b2, b3, b4)))

    cp_kwargs = dict(dimension_semantics=("parallel",))
    if vmem_limit is not None:
        cp_kwargs["vmem_limit_bytes"] = vmem_limit

    def run(single_buffer):
        # Weights/biases: constant block index -> VMEM-resident across all grid
        # steps; single-buffered when supported (halves their VMEM footprint).
        spec_kwargs = {"pipeline_mode": pl.Buffered(1)} if single_buffer else {}

        def resident(a):
            return pl.BlockSpec(a.shape, lambda i: (0, 0), **spec_kwargs)

        return pl.pallas_call(
            _mlp_kernel,
            out_shape=jax.ShapeDtypeStruct((b_pad, output_dim), x.dtype),
            grid=grid,
            in_specs=[pl.BlockSpec((tb, input_dim), lambda i: (i, 0)),
                      resident(w1), resident(b1),
                      resident(w2), resident(b2),
                      resident(w3), resident(b3),
                      resident(w4), resident(b4)],
            out_specs=pl.BlockSpec((tb, output_dim), lambda i: (i, 0)),
            compiler_params=pltpu.CompilerParams(**cp_kwargs),
            cost_estimate=pl.CostEstimate(
                flops=flops, transcendentals=0, bytes_accessed=bytes_accessed),
        )(x_p, w1, b1, w2, b2, w3, b3, w4, b4)

    if single_buffer_weights:
        try:
            out = run(True)
        except Exception:
            # pipeline_mode / Buffered(1) unsupported on this build: fall back
            # to default double-buffered resident weights (still correct).
            out = run(False)
    else:
        out = run(False)

    return out if b_pad == B else out[:B]


def init_params(key, input_dim, hidden_dim, output_dim):
    """Xavier-uniform weights, zero biases (FeedforwardNeuralNetModel.initialize_weights)."""
    dims = [(input_dim, hidden_dim),
            (hidden_dim, hidden_dim),
            (hidden_dim, hidden_dim),
            (hidden_dim, output_dim)]
    params = {}
    keys = jax.random.split(key, len(dims))
    for i, ((fan_in, fan_out), k) in enumerate(zip(dims, keys), start=1):
        limit = math.sqrt(6.0 / (fan_in + fan_out))
        params[f"w{i}"] = jax.random.uniform(
            k, (fan_in, fan_out), dtype=jnp.float32, minval=-limit, maxval=limit)
        params[f"b{i}"] = jnp.zeros((1, fan_out), dtype=jnp.float32)
    return params


def reference_forward(x, params, *, compute_dtype=jnp.bfloat16,
                      epilogue_dtype=jnp.float32):
    """Pure-JAX reference with the same dtype policy as the kernel
    (bf16 MXU inputs, f32 accumulation, epilogue in `epilogue_dtype`)."""
    def lin(h, w, b):
        acc = jnp.dot(h.astype(compute_dtype), w.astype(compute_dtype),
                      preferred_element_type=jnp.float32)
        return acc.astype(epilogue_dtype) + b.astype(epilogue_dtype)

    h = jnp.maximum(lin(x, params["w1"], params["b1"]), 0.0)
    h = jnp.maximum(lin(h, params["w2"], params["b2"]), 0.0)
    h = jnp.maximum(lin(h, params["w3"], params["b3"]), 0.0)
    return lin(h, params["w4"], params["b4"]).astype(x.dtype)


if __name__ == "__main__":
    key = jax.random.PRNGKey(0)
    k_x, k_p = jax.random.split(key)

    # Toy shapes consistent with the module; at this size the kernel is
    # architecture-floor bound — the tiling/dtype choices pay off at scale.
    batch, input_dim, hidden_dim, output_dim = 8, 16, 32, 8

    x = jax.random.normal(k_x, (batch, input_dim), dtype=jnp.float32)
    params = init_params(k_p, input_dim, hidden_dim, output_dim)

    epilogue_dtype = _default_epilogue_dtype()
    prepared = prepare_params(params, epilogue_dtype=epilogue_dtype)  # once, not per call

    out = feedforward_net(x, prepared)
    out = jax.block_until_ready(out)

    ref = reference_forward(x, params, epilogue_dtype=epilogue_dtype)
    assert out.shape == (batch, output_dim), out.shape
    assert jnp.allclose(out, ref, atol=2e-2, rtol=2e-2), "mismatch vs reference"

    print("KERNEL_OK")
</pallas_src>

<mosaic_0001>
module attributes {stable_mosaic.version = 11 : i64} {
  func.func @_mlp_kernel(%arg0: i32, %arg1: memref<8x16xf32, #tpu.memory_space<vmem>>, %arg2: memref<16x128xbf16, #tpu.memory_space<vmem>>, %arg3: memref<1x128xbf16, #tpu.memory_space<vmem>>, %arg4: memref<128x128xbf16, #tpu.memory_space<vmem>>, %arg5: memref<1x128xbf16, #tpu.memory_space<vmem>>, %arg6: memref<128x128xbf16, #tpu.memory_space<vmem>>, %arg7: memref<1x128xbf16, #tpu.memory_space<vmem>>, %arg8: memref<128x8xbf16, #tpu.memory_space<vmem>>, %arg9: memref<1x8xbf16, #tpu.memory_space<vmem>>, %arg10: memref<8x8xf32, #tpu.memory_space<vmem>>) attributes {dimension_semantics = [#tpu.dimension_semantics<parallel>], iteration_bounds = array<i64: 1>, scalar_prefetch = 0 : i64, scratch_operands = 0 : i64, tpu.core_type = #tpu.core_type<tc>, window_params = [{transform_indices = @transform_0, window_bounds = array<i64: 8, 16>}, {pipeline_mode = #tpu.pipeline_mode<synchronous>, transform_indices = @transform_1, window_bounds = array<i64: 16, 128>}, {pipeline_mode = #tpu.pipeline_mode<synchronous>, transform_indices = @transform_2, window_bounds = array<i64: 1, 128>}, {pipeline_mode = #tpu.pipeline_mode<synchronous>, transform_indices = @transform_3, window_bounds = array<i64: 128, 128>}, {pipeline_mode = #tpu.pipeline_mode<synchronous>, transform_indices = @transform_4, window_bounds = array<i64: 1, 128>}, {pipeline_mode = #tpu.pipeline_mode<synchronous>, transform_indices = @transform_5, window_bounds = array<i64: 128, 128>}, {pipeline_mode = #tpu.pipeline_mode<synchronous>, transform_indices = @transform_6, window_bounds = array<i64: 1, 128>}, {pipeline_mode = #tpu.pipeline_mode<synchronous>, transform_indices = @transform_7, window_bounds = array<i64: 128, 8>}, {pipeline_mode = #tpu.pipeline_mode<synchronous>, transform_indices = @transform_8, window_bounds = array<i64: 1, 8>}, {transform_indices = @transform_9, window_bounds = array<i64: 8, 8>}]} {
    %c0_i32 = arith.constant 0 : i32
    %c8_i32 = arith.constant 8 : i32
    %0 = arith.muli %c0_i32, %c8_i32 : i32
    %1 = tpu.assume_multiple %0, 8 : i32
    %2 = arith.index_cast %1 : i32 to index
    %c0 = arith.constant 0 : index
    %3 = vector.load %arg1[%2, %c0] : memref<8x16xf32, #tpu.memory_space<vmem>>, vector<8x16xf32>
    %4 = arith.truncf %3 : vector<8x16xf32> to vector<8x16xbf16>
    %c0_0 = arith.constant 0 : index
    %c0_1 = arith.constant 0 : index
    %5 = vector.load %arg2[%c0_0, %c0_1] : memref<16x128xbf16, #tpu.memory_space<vmem>>, vector<16x128xbf16>
    %cst = arith.constant dense<0.000000e+00> : vector<8x128xf32>
    %6 = tpu.matmul %4, %5, %cst {dimension_numbers = #tpu.dot_dimension_numbers<[1], [0], [0], [1], [0, 0, 1, 1], [], []>} : vector<8x16xbf16>, vector<16x128xbf16>, vector<8x128xf32> -> vector<8x128xf32>
    %7 = arith.truncf %6 : vector<8x128xf32> to vector<8x128xbf16>
    %c0_2 = arith.constant 0 : index
    %c0_3 = arith.constant 0 : index
    %8 = vector.load %arg3[%c0_2, %c0_3] : memref<1x128xbf16, #tpu.memory_space<vmem>>, vector<1x128xbf16>
    %9 = vector.broadcast %8 : vector<1x128xbf16> to vector<8x128xbf16>
    %10 = arith.addf %7, %9 : vector<8x128xbf16>
    %cst_4 = arith.constant 0.000000e+00 : bf16
    %11 = vector.broadcast %cst_4 : bf16 to vector<8x128xbf16>
    %12 = arith.maximumf %10, %11 : vector<8x128xbf16>
    %c0_5 = arith.constant 0 : index
    %c0_6 = arith.constant 0 : index
    %13 = vector.load %arg4[%c0_5, %c0_6] : memref<128x128xbf16, #tpu.memory_space<vmem>>, vector<128x128xbf16>
    %cst_7 = arith.constant dense<0.000000e+00> : vector<8x128xf32>
    %14 = tpu.matmul %12, %13, %cst_7 {dimension_numbers = #tpu.dot_dimension_numbers<[1], [0], [0], [1], [0, 0, 1, 1], [], []>} : vector<8x128xbf16>, vector<128x128xbf16>, vector<8x128xf32> -> vector<8x128xf32>
    %15 = arith.truncf %14 : vector<8x128xf32> to vector<8x128xbf16>
    %c0_8 = arith.constant 0 : index
    %c0_9 = arith.constant 0 : index
    %16 = vector.load %arg5[%c0_8, %c0_9] : memref<1x128xbf16, #tpu.memory_space<vmem>>, vector<1x128xbf16>
    %17 = vector.broadcast %16 : vector<1x128xbf16> to vector<8x128xbf16>
    %18 = arith.addf %15, %17 : vector<8x128xbf16>
    %cst_10 = arith.constant 0.000000e+00 : bf16
    %19 = vector.broadcast %cst_10 : bf16 to vector<8x128xbf16>
    %20 = arith.maximumf %18, %19 : vector<8x128xbf16>
    %c0_11 = arith.constant 0 : index
    %c0_12 = arith.constant 0 : index
    %21 = vector.load %arg6[%c0_11, %c0_12] : memref<128x128xbf16, #tpu.memory_space<vmem>>, vector<128x128xbf16>
    %cst_13 = arith.constant dense<0.000000e+00> : vector<8x128xf32>
    %22 = tpu.matmul %20, %21, %cst_13 {dimension_numbers = #tpu.dot_dimension_numbers<[1], [0], [0], [1], [0, 0, 1, 1], [], []>} : vector<8x128xbf16>, vector<128x128xbf16>, vector<8x128xf32> -> vector<8x128xf32>
    %23 = arith.truncf %22 : vector<8x128xf32> to vector<8x128xbf16>
    %c0_14 = arith.constant 0 : index
    %c0_15 = arith.constant 0 : index
    %24 = vector.load %arg7[%c0_14, %c0_15] : memref<1x128xbf16, #tpu.memory_space<vmem>>, vector<1x128xbf16>
    %25 = vector.broadcast %24 : vector<1x128xbf16> to vector<8x128xbf16>
    %26 = arith.addf %23, %25 : vector<8x128xbf16>
    %cst_16 = arith.constant 0.000000e+00 : bf16
    %27 = vector.broadcast %cst_16 : bf16 to vector<8x128xbf16>
    %28 = arith.maximumf %26, %27 : vector<8x128xbf16>
    %c0_17 = arith.constant 0 : index
    %c0_18 = arith.constant 0 : index
    %29 = vector.load %arg8[%c0_17, %c0_18] : memref<128x8xbf16, #tpu.memory_space<vmem>>, vector<128x8xbf16>
    %cst_19 = arith.constant dense<0.000000e+00> : vector<8x8xf32>
    %30 = tpu.matmul %28, %29, %cst_19 {dimension_numbers = #tpu.dot_dimension_numbers<[1], [0], [0], [1], [0, 0, 1, 1], [], []>} : vector<8x128xbf16>, vector<128x8xbf16>, vector<8x8xf32> -> vector<8x8xf32>
    %31 = arith.truncf %30 : vector<8x8xf32> to vector<8x8xbf16>
    %c0_20 = arith.constant 0 : index
    %c0_21 = arith.constant 0 : index
    %32 = vector.load %arg9[%c0_20, %c0_21] : memref<1x8xbf16, #tpu.memory_space<vmem>>, vector<1x8xbf16>
    %33 = vector.broadcast %32 : vector<1x8xbf16> to vector<8x8xbf16>
    %34 = arith.addf %31, %33 : vector<8x8xbf16>
    %35 = arith.extf %34 : vector<8x8xbf16> to vector<8x8xf32>
    %36 = arith.index_cast %1 : i32 to index
    %c0_22 = arith.constant 0 : index
    %37 = vector.load %arg10[%36, %c0_22] : memref<8x8xf32, #tpu.memory_space<vmem>>, vector<8x8xf32>
    tpu.vector_store %arg10[%36, %c0_22], %35 {strides = array<i32>} : memref<8x8xf32, #tpu.memory_space<vmem>>, vector<8x8xf32>,
    %c1_i32 = arith.constant 1 : i32
    return
  }
  func.func @transform_0(%arg0: i32) -> (i32, i32) {
    %c0_i32 = arith.constant 0 : i32
    %c0_i32_0 = arith.constant 0 : i32
    return %arg0, %c0_i32 : i32, i32
  }
  func.func @transform_1(%arg0: i32) -> (i32, i32) {
    %c0_i32 = arith.constant 0 : i32
    %c0_i32_0 = arith.constant 0 : i32
    %c0_i32_1 = arith.constant 0 : i32
    return %c0_i32, %c0_i32_0 : i32, i32
  }
  func.func @transform_2(%arg0: i32) -> (i32, i32) {
    %c0_i32 = arith.constant 0 : i32
    %c0_i32_0 = arith.constant 0 : i32
    %c0_i32_1 = arith.constant 0 : i32
    return %c0_i32, %c0_i32_0 : i32, i32
  }
  func.func @transform_3(%arg0: i32) -> (i32, i32) {
    %c0_i32 = arith.constant 0 : i32
    %c0_i32_0 = arith.constant 0 : i32
    %c0_i32_1 = arith.constant 0 : i32
    return %c0_i32, %c0_i32_0 : i32, i32
  }
  func.func @transform_4(%arg0: i32) -> (i32, i32) {
    %c0_i32 = arith.constant 0 : i32
    %c0_i32_0 = arith.constant 0 : i32
    %c0_i32_1 = arith.constant 0 : i32
    return %c0_i32, %c0_i32_0 : i32, i32
  }
  func.func @transform_5(%arg0: i32) -> (i32, i32) {
    %c0_i32 = arith.constant 0 : i32
    %c0_i32_0 = arith.constant 0 : i32
    %c0_i32_1 = arith.constant 0 : i32
    return %c0_i32, %c0_i32_0 : i32, i32
  }
  func.func @transform_6(%arg0: i32) -> (i32, i32) {
    %c0_i32 = arith.constant 0 : i32
    %c0_i32_0 = arith.constant 0 : i32
    %c0_i32_1 = arith.constant 0 : i32
    return %c0_i32, %c0_i32_0 : i32, i32
  }
  func.func @transform_7(%arg0: i32) -> (i32, i32) {
    %c0_i32 = arith.constant 0 : i32
    %c0_i32_0 = arith.constant 0 : i32
    %c0_i32_1 = arith.constant 0 : i32
    return %c0_i32, %c0_i32_0 : i32, i32
  }
  func.func @transform_8(%arg0: i32) -> (i32, i32) {
    %c0_i32 = arith.constant 0 : i32
    %c0_i32_0 = arith.constant 0 : i32
    %c0_i32_1 = arith.constant 0 : i32
    return %c0_i32, %c0_i32_0 : i32, i32
  }
  func.func @transform_9(%arg0: i32) -> (i32, i32) {
    %c0_i32 = arith.constant 0 : i32
    %c0_i32_0 = arith.constant 0 : i32
    return %arg0, %c0_i32 : i32, i32
  }
}

module attributes {stable_mosaic.version = 11 : i64} {
  func.func @_mlp_kernel(%arg0: i32, %arg1: memref<8x16xf32, #tpu.memory_space<vmem>>, %arg2: memref<16x128xbf16, #tpu.memory_space<vmem>>, %arg3: memref<1x128xbf16, #tpu.memory_space<vmem>>, %arg4: memref<128x128xbf16, #tpu.memory_space<vmem>>, %arg5: memref<1x128xbf16, #tpu.memory_space<vmem>>, %arg6: memref<128x128xbf16, #tpu.memory_space<vmem>>, %arg7: memref<1x128xbf16, #tpu.memory_space<vmem>>, %arg8: memref<128x8xbf16, #tpu.memory_space<vmem>>, %arg9: memref<1x8xbf16, #tpu.memory_space<vmem>>, %arg10: memref<8x8xf32, #tpu.memory_space<vmem>>) attributes {dimension_semantics = [#tpu.dimension_semantics<parallel>], iteration_bounds = array<i64: 1>, scalar_prefetch = 0 : i64, scratch_operands = 0 : i64, tpu.core_type = #tpu.core_type<tc>, window_params = [{transform_indices = @transform_0, window_bounds = array<i64: 8, 16>}, {pipeline_mode = #tpu.pipeline_mode<synchronous>, transform_indices = @transform_1, window_bounds = array<i64: 16, 128>}, {pipeline_mode = #tpu.pipeline_mode<synchronous>, transform_indices = @transform_2, window_bounds = array<i64: 1, 128>}, {pipeline_mode = #tpu.pipeline_mode<synchronous>, transform_indices = @transform_3, window_bounds = array<i64: 128, 128>}, {pipeline_mode = #tpu.pipeline_mode<synchronous>, transform_indices = @transform_4, window_bounds = array<i64: 1, 128>}, {pipeline_mode = #tpu.pipeline_mode<synchronous>, transform_indices = @transform_5, window_bounds = array<i64: 128, 128>}, {pipeline_mode = #tpu.pipeline_mode<synchronous>, transform_indices = @transform_6, window_bounds = array<i64: 1, 128>}, {pipeline_mode = #tpu.pipeline_mode<synchronous>, transform_indices = @transform_7, window_bounds = array<i64: 128, 8>}, {pipeline_mode = #tpu.pipeline_mode<synchronous>, transform_indices = @transform_8, window_bounds = array<i64: 1, 8>}, {transform_indices = @transform_9, window_bounds = array<i64: 8, 8>}]} {
    %c0_i32 = arith.constant 0 : i32
    %c8_i32 = arith.constant 8 : i32
    %0 = arith.muli %c0_i32, %c8_i32 : i32
    %1 = tpu.assume_multiple %0, 8 : i32
    %2 = arith.index_cast %1 : i32 to index
    %c0 = arith.constant 0 : index
    %3 = vector.load %arg1[%2, %c0] : memref<8x16xf32, #tpu.memory_space<vmem>>, vector<8x16xf32>
    %4 = arith.truncf %3 : vector<8x16xf32> to vector<8x16xbf16>
    %c0_0 = arith.constant 0 : index
    %c0_1 = arith.constant 0 : index
    %5 = vector.load %arg2[%c0_0, %c0_1] : memref<16x128xbf16, #tpu.memory_space<vmem>>, vector<16x128xbf16>
    %cst = arith.constant dense<0.000000e+00> : vector<8x128xf32>
    %6 = tpu.matmul %4, %5, %cst {dimension_numbers = #tpu.dot_dimension_numbers<[1], [0], [0], [1], [0, 0, 1, 1], [], []>} : vector<8x16xbf16>, vector<16x128xbf16>, vector<8x128xf32> -> vector<8x128xf32>
    %7 = arith.truncf %6 : vector<8x128xf32> to vector<8x128xbf16>
    %c0_2 = arith.constant 0 : index
    %c0_3 = arith.constant 0 : index
    %8 = vector.load %arg3[%c0_2, %c0_3] : memref<1x128xbf16, #tpu.memory_space<vmem>>, vector<1x128xbf16>
    %9 = vector.broadcast %8 : vector<1x128xbf16> to vector<8x128xbf16>
    %10 = arith.addf %7, %9 : vector<8x128xbf16>
    %cst_4 = arith.constant 0.000000e+00 : bf16
    %11 = vector.broadcast %cst_4 : bf16 to vector<8x128xbf16>
    %12 = arith.maximumf %10, %11 : vector<8x128xbf16>
    %c0_5 = arith.constant 0 : index
    %c0_6 = arith.constant 0 : index
    %13 = vector.load %arg4[%c0_5, %c0_6] : memref<128x128xbf16, #tpu.memory_space<vmem>>, vector<128x128xbf16>
    %cst_7 = arith.constant dense<0.000000e+00> : vector<8x128xf32>
    %14 = tpu.matmul %12, %13, %cst_7 {dimension_numbers = #tpu.dot_dimension_numbers<[1], [0], [0], [1], [0, 0, 1, 1], [], []>} : vector<8x128xbf16>, vector<128x128xbf16>, vector<8x128xf32> -> vector<8x128xf32>
    %15 = arith.truncf %14 : vector<8x128xf32> to vector<8x128xbf16>
    %c0_8 = arith.constant 0 : index
    %c0_9 = arith.constant 0 : index
    %16 = vector.load %arg5[%c0_8, %c0_9] : memref<1x128xbf16, #tpu.memory_space<vmem>>, vector<1x128xbf16>
    %17 = vector.broadcast %16 : vector<1x128xbf16> to vector<8x128xbf16>
    %18 = arith.addf %15, %17 : vector<8x128xbf16>
    %cst_10 = arith.constant 0.000000e+00 : bf16
    %19 = vector.broadcast %cst_10 : bf16 to vector<8x128xbf16>
    %20 = arith.maximumf %18, %19 : vector<8x128xbf16>
    %c0_11 = arith.constant 0 : index
    %c0_12 = arith.constant 0 : index
    %21 = vector.load %arg6[%c0_11, %c0_12] : memref<128x128xbf16, #tpu.memory_space<vmem>>, vector<128x128xbf16>
    %cst_13 = arith.constant dense<0.000000e+00> : vector<8x128xf32>
    %22 = tpu.matmul %20, %21, %cst_13 {dimension_numbers = #tpu.dot_dimension_numbers<[1], [0], [0], [1], [0, 0, 1, 1], [], []>} : vector<8x128xbf16>, vector<128x128xbf16>, vector<8x128xf32> -> vector<8x128xf32>
    %23 = arith.truncf %22 : vector<8x128xf32> to vector<8x128xbf16>
    %c0_14 = arith.constant 0 : index
    %c0_15 = arith.constant 0 : index
    %24 = vector.load %arg7[%c0_14, %c0_15] : memref<1x128xbf16, #tpu.memory_space<vmem>>, vector<1x128xbf16>
    %25 = vector.broadcast %24 : vector<1x128xbf16> to vector<8x128xbf16>
    %26 = arith.addf %23, %25 : vector<8x128xbf16>
    %cst_16 = arith.constant 0.000000e+00 : bf16
    %27 = vector.broadcast %cst_16 : bf16 to vector<8x128xbf16>
    %28 = arith.maximumf %26, %27 : vector<8x128xbf16>
    %c0_17 = arith.constant 0 : index
    %c0_18 = arith.constant 0 : index
    %29 = vector.load %arg8[%c0_17, %c0_18] : memref<128x8xbf16, #tpu.memory_space<vmem>>, vector<128x8xbf16>
    %cst_19 = arith.constant dense<0.000000e+00> : vector<8x8xf32>
    %30 = tpu.matmul %28, %29, %cst_19 {dimension_numbers = #tpu.dot_dimension_numbers<[1], [0], [0], [1], [0, 0, 1, 1], [], []>} : vector<8x128xbf16>, vector<128x8xbf16>, vector<8x8xf32> -> vector<8x8xf32>
    %31 = arith.truncf %30 : vector<8x8xf32> to vector<8x8xbf16>
    %c0_20 = arith.constant 0 : index
    %c0_21 = arith.constant 0 : index
    %32 = vector.load %arg9[%c0_20, %c0_21] : memref<1x8xbf16, #tpu.memory_space<vmem>>, vector<1x8xbf16>
    %33 = vector.broadcast %32 : vector<1x8xbf16> to vector<8x8xbf16>
    %34 = arith.addf %31, %33 : vector<8x8xbf16>
    %35 = arith.extf %34 : vector<8x8xbf16> to vector<8x8xf32>
    %36 = arith.index_cast %1 : i32 to index
    %c0_22 = arith.constant 0 : index
    %37 = vector.load %arg10[%36, %c0_22] : memref<8x8xf32, #tpu.memory_space<vmem>>, vector<8x8xf32>
    tpu.vector_store %arg10[%36, %c0_22], %35 {strides = array<i32>} : memref<8x8xf32, #tpu.memory_space<vmem>>, vector<8x8xf32>,
    %c1_i32 = arith.constant 1 : i32
    return
  }
  func.func @transform_0(%arg0: i32) -> (i32, i32) {
    %c0_i32 = arith.constant 0 : i32
    %c0_i32_0 = arith.constant 0 : i32
    return %arg0, %c0_i32 : i32, i32
  }
  func.func @transform_1(%arg0: i32) -> (i32, i32) {
    %c0_i32 = arith.constant 0 : i32
    %c0_i32_0 = arith.constant 0 : i32
    %c0_i32_1 = arith.constant 0 : i32
    return %c0_i32, %c0_i32_0 : i32, i32
  }
  func.func @transform_2(%arg0: i32) -> (i32, i32) {
    %c0_i32 = arith.constant 0 : i32
    %c0_i32_0 = arith.constant 0 : i32
    %c0_i32_1 = arith.constant 0 : i32
    return %c0_i32, %c0_i32_0 : i32, i32
  }
  func.func @transform_3(%arg0: i32) -> (i32, i32) {
    %c0_i32 = arith.constant 0 : i32
    %c0_i32_0 = arith.constant 0 : i32
    %c0_i32_1 = arith.constant 0 : i32
    return %c0_i32, %c0_i32_0 : i32, i32
  }
  func.func @transform_4(%arg0: i32) -> (i32, i32) {
    %c0_i32 = arith.constant 0 : i32
    %c0_i32_0 = arith.constant 0 : i32
    %c0_i32_1 = arith.constant 0 : i32
    return %c0_i32, %c0_i32_0 : i32, i32
  }
  func.func @transform_5(%arg0: i32) -> (i32, i32) {
    %c0_i32 = arith.constant 0 : i32
    %c0_i32_0 = arith.constant 0 : i32
    %c0_i32_1 = arith.constant 0 : i32
    return %c0_i32, %c0_i32_0 : i32, i32
  }
  func.func @transform_6(%arg0: i32) -> (i32, i32) {
    %c0_i32 = arith.constant 0 : i32
    %c0_i32_0 = arith.constant 0 : i32
    %c0_i32_1 = arith.constant 0 : i32
    return %c0_i32, %c0_i32_0 : i32, i32
  }
  func.func @transform_7(%arg0: i32) -> (i32, i32) {
    %c0_i32 = arith.constant 0 : i32
    %c0_i32_0 = arith.constant 0 : i32
    %c0_i32_1 = arith.constant 0 : i32
    return %c0_i32, %c0_i32_0 : i32, i32
  }
  func.func @transform_8(%arg0: i32) -> (i32, i32) {
    %c0_i32 = arith.constant 0 : i32
    %c0_i32_0 = arith.constant 0 : i32
    %c0_i32_1 = arith.constant 0 : i32
    return %c0_i32, %c0_i32_0 : i32, i32
  }
  func.func @transform_9(%arg0: i32) -> (i32, i32) {
    %c0_i32 = arith.constant 0 : i32
    %c0_i32_0 = arith.constant 0 : i32
    return %arg0, %c0_i32 : i32, i32
  }
}

</mosaic_0001>

<llo_original>
// kernel: tpu_custom_call.1
$region0: #{tpu_custom_call.1}
  #allocation0 [shape = 'u32[]', space=smem, size = 0x4, offset = 0x4, fixed_abs, tag = 'smem constant byte address 0x4 - core index']
  #allocation1 [shape = 'u32[72,128]{1,0:T(1,128)}', space=vmem, size = 0x9000, scoped, tag = 'internal scratch']
  %s0 = inlined_call_operand.hbm [shape: f32[8,16], index: 0, kind: input, shape index: {}]
  %s1 = inlined_call_operand.hbm [shape: bf16[16,128], index: 1, kind: input, shape index: {}]
  %s2 = inlined_call_operand.vmem [shape: bf16[1,128], index: 2, kind: input, shape index: {}]
  %s3 = inlined_call_operand.vmem [shape: bf16[128,128], index: 3, kind: input, shape index: {}]
  %s4 = inlined_call_operand.vmem [shape: bf16[1,128], index: 4, kind: input, shape index: {}]
  %s5 = inlined_call_operand.hbm [shape: bf16[128,128], index: 5, kind: input, shape index: {}]
  %s6 = inlined_call_operand.vmem [shape: bf16[1,128], index: 6, kind: input, shape index: {}]
  %s7 = inlined_call_operand.vmem [shape: bf16[128,8], index: 7, kind: input, shape index: {}]
  %s8 = inlined_call_operand.vmem [shape: bf16[1,8], index: 8, kind: input, shape index: {}]
  %s9 = inlined_call_operand.hbm [shape: f32[8,8], index: 9, kind: output, shape index: {}]
  %s10 = sld [smem:[#allocation0]]
  $region58: #{tpu_custom_call.1} parent=0
    _
  %s12 = ssub.s32 1, %s10
  %s13 = scalar_select 0, %s12, %s10
  $region1: #{tpu_custom_call.1} parent=0
    #allocation2 [shape = 'u8[4096]{0}', space=vmem, size = 0x1000, scoped, tag = 'input window, operand 0, single buffered']
    #allocation3 [shape = 's32[1]{0}', space=sflag, size = 0x4, scoped, tag = 'scoped memory for tpu_custom_call.1']
    #allocation4 [shape = 's32[1]{0}', space=sflag, size = 0x4, scoped, tag = 'scoped memory for tpu_custom_call.1']
    #allocation5 [shape = 'u8[4096]{0}', space=vmem, size = 0x1000, scoped, tag = 'input window, operand 1, single buffered']
    #allocation6 [shape = 's32[1]{0}', space=sflag, size = 0x4, scoped, tag = 'scoped memory for tpu_custom_call.1']
    #allocation7 [shape = 'u8[32768]{0}', space=vmem, size = 0x8000, scoped, tag = 'input window, operand 5, single buffered']
    #allocation8 [shape = 'u8[4096]{0}', space=vmem, size = 0x1000, scoped, tag = 'output window, operand 0, single buffered']
    %14 = vsyncpa [#allocation3], 0
    %15 = vsyncpa [#allocation6], 0
    %16 = vsyncpa [#allocation4], 0
    // Predicated region
    $region2: #{tpu_custom_call.1} parent=1 // pred_check
      _
    $region3: #{tpu_custom_call.1} parent=1 // pred_check_branch
      %18 = sbr.rel (0) target = $region5
    $region4: #{tpu_custom_call.1} parent=1 // pred_region
      %20 = vsyncadd [#allocation3], 0
      %s22 = sshll.u32 %s0, 4
      %s23 = int_to_ptr.hbm [resolvable:$true] %s22
      %s24 = sshll.u32 [#allocation2], 4
      %s25 = int_to_ptr.vmem [resolvable:$true] %s24
      %27 = dma.hbm_to_vmem [thread:$0]  %s23, 128, %s25, [#allocation3]
    $region5: #{tpu_custom_call.1} parent=1 // pred_fallthru
      _
    // Predicated region
    $region6: #{tpu_custom_call.1} parent=1 // pred_check
      _
    $region7: #{tpu_custom_call.1} parent=1 // pred_check_branch
      %29 = sbr.rel (0) target = $region9
    $region8: #{tpu_custom_call.1} parent=1 // pred_region
      %31 = vsyncadd [#allocation6], 0
      %s32 = sshll.u32 %s1, 4
      %s33 = int_to_ptr.hbm [resolvable:$true] %s32
      %s34 = sshll.u32 [#allocation5], 4
      %s35 = int_to_ptr.vmem [resolvable:$true] %s34
      %40 = dma.hbm_to_vmem [thread:$0]  %s33, 128, %s35, [#allocation6], 64, 64, 4
    $region9: #{tpu_custom_call.1} parent=1 // pred_fallthru
      _
    // Predicated region
    $region10: #{tpu_custom_call.1} parent=1 // pred_check
      _
    $region11: #{tpu_custom_call.1} parent=1 // pred_check_branch
      %42 = sbr.rel (0) target = $region13
    $region12: #{tpu_custom_call.1} parent=1 // pred_region
      _
    $region13: #{tpu_custom_call.1} parent=1 // pred_fallthru
      _
    // Predicated region
    $region14: #{tpu_custom_call.1} parent=1 // pred_check
      _
    $region15: #{tpu_custom_call.1} parent=1 // pred_check_branch
      %44 = sbr.rel (0) target = $region17
    $region16: #{tpu_custom_call.1} parent=1 // pred_region
      _
    $region17: #{tpu_custom_call.1} parent=1 // pred_fallthru
      _
    // Predicated region
    $region18: #{tpu_custom_call.1} parent=1 // pred_check
      _
    $region19: #{tpu_custom_call.1} parent=1 // pred_check_branch
      %46 = sbr.rel (0) target = $region21
    $region20: #{tpu_custom_call.1} parent=1 // pred_region
      _
    $region21: #{tpu_custom_call.1} parent=1 // pred_fallthru
      _
    // Predicated region
    $region22: #{tpu_custom_call.1} parent=1 // pred_check
      _
    $region23: #{tpu_custom_call.1} parent=1 // pred_check_branch
      %48 = sbr.rel (0) target = $region25
    $region24: #{tpu_custom_call.1} parent=1 // pred_region
      %50 = vsyncadd [#allocation6], 0
      %s51 = sshll.u32 %s5, 4
      %s52 = int_to_ptr.hbm [resolvable:$true] %s51
      %s53 = sshll.u32 [#allocation7], 4
      %s54 = int_to_ptr.vmem [resolvable:$true] %s53
      %59 = dma.hbm_to_vmem [thread:$0]  %s52, 1024, %s54, [#allocation6], 64, 64, 4
    $region25: #{tpu_custom_call.1} parent=1 // pred_fallthru
      _
    // Predicated region
    $region26: #{tpu_custom_call.1} parent=1 // pred_check
      _
    $region27: #{tpu_custom_call.1} parent=1 // pred_check_branch
      %61 = sbr.rel (0) target = $region29
    $region28: #{tpu_custom_call.1} parent=1 // pred_region
      _
    $region29: #{tpu_custom_call.1} parent=1 // pred_fallthru
      _
    // Predicated region
    $region30: #{tpu_custom_call.1} parent=1 // pred_check
      _
    $region31: #{tpu_custom_call.1} parent=1 // pred_check_branch
      %63 = sbr.rel (0) target = $region33
    $region32: #{tpu_custom_call.1} parent=1 // pred_region
      _
    $region33: #{tpu_custom_call.1} parent=1 // pred_fallthru
      _
    // Predicated region
    $region34: #{tpu_custom_call.1} parent=1 // pred_check
      _
    $region35: #{tpu_custom_call.1} parent=1 // pred_check_branch
      %65 = sbr.rel (0) target = $region37
    $region36: #{tpu_custom_call.1} parent=1 // pred_region
      _
    $region37: #{tpu_custom_call.1} parent=1 // pred_fallthru
      _
    // Predicated region
    $region38: #{tpu_custom_call.1} parent=1 // pred_check
      _
    $region39: #{tpu_custom_call.1} parent=1 // pred_check_branch
      %67 = sbr.rel (0) target = $region41
    $region40: #{tpu_custom_call.1} parent=1 // pred_region
      %69 = dma.done [#allocation3], 128
    $region41: #{tpu_custom_call.1} parent=1 // pred_fallthru
      _
    // Predicated region
    $region42: #{tpu_custom_call.1} parent=1 // pred_check
      _
    $region43: #{tpu_custom_call.1} parent=1 // pred_check_branch
      %71 = sbr.rel (0) target = $region45
    $region44: #{tpu_custom_call.1} parent=1 // pred_region
      %73 = dma.done [#allocation6], 128
    $region45: #{tpu_custom_call.1} parent=1 // pred_fallthru
      _
    // Predicated region
    $region46: #{tpu_custom_call.1} parent=1 // pred_check
      _
    $region47: #{tpu_custom_call.1} parent=1 // pred_check_branch
      %75 = sbr.rel (0) target = $region49
    $region48: #{tpu_custom_call.1} parent=1 // pred_region
      %77 = dma.done [#allocation6], 1024
    $region49: #{tpu_custom_call.1} parent=1 // pred_fallthru
      _
    %v79 = vld [vmem:[#allocation2] sm:$0xff]
    %v80 = vpack.c.bf16 %v79, %v79
    %v81 = vld [vmem:[#allocation5] sm:$0xf]
    %v82 = vld [vmem:[#allocation5 + $0x4] sm:$0xf]
    %v85 = vunpack.c.l.b16 %v81
    %v86 = vunpack.c.l.b16 %v82
    %v87 = vpack.c.b16 %v86, %v85
    %vm89 = vcmask 130048
    %v91 = vsel %vm89, %v80, 0
    %93 = vmatpush.bf16.msra.mxu0 0
    %94 = vmatpush.bf16.msra.mxu0 0
    %95 = vmatpush.bf16.msra.mxu0 0
    %96 = vmatpush.bf16.msra.mxu0 0
    %97 = vmatpush.bf16.msra.mxu0 0
    %98 = vmatpush.bf16.msra.mxu0 0
    %99 = vmatpush.bf16.msra.mxu0 0
    %100 = vmatpush.bf16.msra.mxu0 %v87
    %101 = vmatmul.bf16.gmra.mxu0 %v91
    %v102 = vpop.f32.mrf.mxu0
    %v103 = vadd.f32 0.0, %v102
    %v104 = vpop.f32.mrf.mxu0
    %105 = vdwg.mxu0
    %v106 = vpack.c.bf16 %v103, %v103
    %v107 = vld [vmem:[%s2] sm:$0x1]
    %v109 = vpack.i.b16 %v107, %v107
    %v111 = vperm.slane %v109, 0
    %v112 = vunpack.c.l.bf16 %v106
    %v113 = vunpack.c.l.bf16 %v111
    %v114 = vadd.f32 %v112, %v113
    %v115 = vpack.c.bf16 %v114, %v114
    %v116 = vunpack.c.l.bf16 %v115
    %v117 = vmax.f32 %v116, 0.0
    %v118 = vpack.c.bf16 %v117, %v117
    %v119 = vld [vmem:[%s3] sm:$0xf]
    %v120 = vld [vmem:[%s3 + $0x4] sm:$0xf]
    %v121 = vld [vmem:[%s3 + $0x8] sm:$0xf]
    %v122 = vld [vmem:[%s3 + $0xc] sm:$0xf]
    %v123 = vld [vmem:[%s3 + $0x10] sm:$0xf]
    %v124 = vld [vmem:[%s3 + $0x14] sm:$0xf]
    %v125 = vld [vmem:[%s3 + $0x18] sm:$0xf]
    %v126 = vld [vmem:[%s3 + $0x1c] sm:$0xf]
    %v127 = vld [vmem:[%s3 + $0x20] sm:$0xf]
    %v128 = vld [vmem:[%s3 + $0x24] sm:$0xf]
    %v129 = vld [vmem:[%s3 + $0x28] sm:$0xf]
    %v130 = vld [vmem:[%s3 + $0x2c] sm:$0xf]
    %v131 = vld [vmem:[%s3 + $0x30] sm:$0xf]
    %v132 = vld [vmem:[%s3 + $0x34] sm:$0xf]
    %v133 = vld [vmem:[%s3 + $0x38] sm:$0xf]
    %v134 = vld [vmem:[%s3 + $0x3c] sm:$0xf]
    %v151 = vunpack.c.l.b16 %v119
    %v152 = vunpack.c.l.b16 %v120
    %v153 = vunpack.c.l.b16 %v121
    %v154 = vunpack.c.l.b16 %v122
    %v155 = vunpack.c.l.b16 %v123
    %v156 = vunpack.c.l.b16 %v124
    %v157 = vunpack.c.l.b16 %v125
    %v158 = vunpack.c.l.b16 %v126
    %v159 = vunpack.c.l.b16 %v127
    %v160 = vunpack.c.l.b16 %v128
    %v161 = vunpack.c.l.b16 %v129
    %v162 = vunpack.c.l.b16 %v130
    %v163 = vunpack.c.l.b16 %v131
    %v164 = vunpack.c.l.b16 %v132
    %v165 = vunpack.c.l.b16 %v133
    %v166 = vunpack.c.l.b16 %v134
    %v167 = vpack.c.b16 %v152, %v151
    %v168 = vpack.c.b16 %v154, %v153
    %v169 = vpack.c.b16 %v156, %v155
    %v170 = vpack.c.b16 %v158, %v157
    %v171 = vpack.c.b16 %v160, %v159
    %v172 = vpack.c.b16 %v162, %v161
    %v173 = vpack.c.b16 %v164, %v163
    %v174 = vpack.c.b16 %v166, %v165
    %183 = vmatpush.bf16.msra.mxu0 %v174
    %184 = vmatpush.bf16.msra.mxu0 %v173
    %185 = vmatpush.bf16.msra.mxu0 %v172
    %186 = vmatpush.bf16.msra.mxu0 %v171
    %187 = vmatpush.bf16.msra.mxu0 %v170
    %188 = vmatpush.bf16.msra.mxu0 %v169
    %189 = vmatpush.bf16.msra.mxu0 %v168
    %190 = vmatpush.bf16.msra.mxu0 %v167
    %191 = vmatmul.bf16.gmra.mxu0 %v118
    %v192 = vpop.f32.mrf.mxu0
    %v193 = vadd.f32 0.0, %v192
    %v194 = vpop.f32.mrf.mxu0
    %195 = vdwg.mxu0
    %v196 = vpack.c.bf16 %v193, %v193
    %v197 = vld [vmem:[%s4] sm:$0x1]
    %v199 = vpack.i.b16 %v197, %v197
    %v201 = vperm.slane %v199, 0
    %v202 = vunpack.c.l.bf16 %v196
    %v203 = vunpack.c.l.bf16 %v201
    %v204 = vadd.f32 %v202, %v203
    %v205 = vpack.c.bf16 %v204, %v204
    %v206 = vunpack.c.l.bf16 %v205
    %v207 = vmax.f32 %v206, 0.0
    %v208 = vpack.c.bf16 %v207, %v207
    %v209 = vld [vmem:[#allocation7] sm:$0xf]
    %v210 = vld [vmem:[#allocation7 + $0x4] sm:$0xf]
    %v211 = vld [vmem:[#allocation7 + $0x8] sm:$0xf]
    %v212 = vld [vmem:[#allocation7 + $0xc] sm:$0xf]
    %v213 = vld [vmem:[#allocation7 + $0x10] sm:$0xf]
    %v214 = vld [vmem:[#allocation7 + $0x14] sm:$0xf]
    %v215 = vld [vmem:[#allocation7 + $0x18] sm:$0xf]
    %v216 = vld [vmem:[#allocation7 + $0x1c] sm:$0xf]
    %v217 = vld [vmem:[#allocation7 + $0x20] sm:$0xf]
    %v218 = vld [vmem:[#allocation7 + $0x24] sm:$0xf]
    %v219 = vld [vmem:[#allocation7 + $0x28] sm:$0xf]
    %v220 = vld [vmem:[#allocation7 + $0x2c] sm:$0xf]
    %v221 = vld [vmem:[#allocation7 + $0x30] sm:$0xf]
    %v222 = vld [vmem:[#allocation7 + $0x34] sm:$0xf]
    %v223 = vld [vmem:[#allocation7 + $0x38] sm:$0xf]
    %v224 = vld [vmem:[#allocation7 + $0x3c] sm:$0xf]
    %v241 = vunpack.c.l.b16 %v209
    %v242 = vunpack.c.l.b16 %v210
    %v243 = vunpack.c.l.b16 %v211
    %v244 = vunpack.c.l.b16 %v212
    %v245 = vunpack.c.l.b16 %v213
    %v246 = vunpack.c.l.b16 %v214
    %v247 = vunpack.c.l.b16 %v215
    %v248 = vunpack.c.l.b16 %v216
    %v249 = vunpack.c.l.b16 %v217
    %v250 = vunpack.c.l.b16 %v218
    %v251 = vunpack.c.l.b16 %v219
    %v252 = vunpack.c.l.b16 %v220
    %v253 = vunpack.c.l.b16 %v221
    %v254 = vunpack.c.l.b16 %v222
    %v255 = vunpack.c.l.b16 %v223
    %v256 = vunpack.c.l.b16 %v224
    %v257 = vpack.c.b16 %v242, %v241
    %v258 = vpack.c.b16 %v244, %v243
    %v259 = vpack.c.b16 %v246, %v245
    %v260 = vpack.c.b16 %v248, %v247
    %v261 = vpack.c.b16 %v250, %v249
    %v262 = vpack.c.b16 %v252, %v251
    %v263 = vpack.c.b16 %v254, %v253
    %v264 = vpack.c.b16 %v256, %v255
    %273 = vmatpush.bf16.msra.mxu0 %v264
    %274 = vmatpush.bf16.msra.mxu0 %v263
    %275 = vmatpush.bf16.msra.mxu0 %v262
    %276 = vmatpush.bf16.msra.mxu0 %v261
    %277 = vmatpush.bf16.msra.mxu0 %v260
    %278 = vmatpush.bf16.msra.mxu0 %v259
    %279 = vmatpush.bf16.msra.mxu0 %v258
    %280 = vmatpush.bf16.msra.mxu0 %v257
    %281 = vmatmul.bf16.gmra.mxu0 %v208
    %v282 = vpop.f32.mrf.mxu0
    %v283 = vadd.f32 0.0, %v282
    %v284 = vpop.f32.mrf.mxu0
    %285 = vdwg.mxu0
    %v286 = vpack.c.bf16 %v283, %v283
    %v287 = vld [vmem:[%s6] sm:$0x1]
    %v289 = vpack.i.b16 %v287, %v287
    %v291 = vperm.slane %v289, 0
    %v292 = vunpack.c.l.bf16 %v286
    %v293 = vunpack.c.l.bf16 %v291
    %v294 = vadd.f32 %v292, %v293
    %v295 = vpack.c.bf16 %v294, %v294
    %v296 = vunpack.c.l.bf16 %v295
    %v297 = vmax.f32 %v296, 0.0
    %v298 = vpack.c.bf16 %v297, %v297
    %v299 = vld [vmem:[%s7] sm:$0xf]
    %v300 = vld [vmem:[%s7 + $0x4] sm:$0xf]
    %v301 = vld [vmem:[%s7 + $0x8] sm:$0xf]
    %v302 = vld [vmem:[%s7 + $0xc] sm:$0xf]
    %v303 = vld [vmem:[%s7 + $0x10] sm:$0xf]
    %v304 = vld [vmem:[%s7 + $0x14] sm:$0xf]
    %v305 = vld [vmem:[%s7 + $0x18] sm:$0xf]
    %v306 = vld [vmem:[%s7 + $0x1c] sm:$0xf]
    %v307 = vld [vmem:[%s7 + $0x20] sm:$0xf]
    %v308 = vld [vmem:[%s7 + $0x24] sm:$0xf]
    %v309 = vld [vmem:[%s7 + $0x28] sm:$0xf]
    %v310 = vld [vmem:[%s7 + $0x2c] sm:$0xf]
    %v311 = vld [vmem:[%s7 + $0x30] sm:$0xf]
    %v312 = vld [vmem:[%s7 + $0x34] sm:$0xf]
    %v313 = vld [vmem:[%s7 + $0x38] sm:$0xf]
    %v314 = vld [vmem:[%s7 + $0x3c] sm:$0xf]
    %v331 = vunpack.c.l.b16 %v299
    %v332 = vunpack.c.l.b16 %v300
    %v333 = vunpack.c.l.b16 %v301
    %v334 = vunpack.c.l.b16 %v302
    %v335 = vunpack.c.l.b16 %v303
    %v336 = vunpack.c.l.b16 %v304
    %v337 = vunpack.c.l.b16 %v305
    %v338 = vunpack.c.l.b16 %v306
    %v339 = vunpack.c.l.b16 %v307
    %v340 = vunpack.c.l.b16 %v308
    %v341 = vunpack.c.l.b16 %v309
    %v342 = vunpack.c.l.b16 %v310
    %v343 = vunpack.c.l.b16 %v311
    %v344 = vunpack.c.l.b16 %v312
    %v345 = vunpack.c.l.b16 %v313
    %v346 = vunpack.c.l.b16 %v314
    %v347 = vpack.c.b16 %v332, %v331
    %v348 = vpack.c.b16 %v334, %v333
    %v349 = vpack.c.b16 %v336, %v335
    %v350 = vpack.c.b16 %v338, %v337
    %v351 = vpack.c.b16 %v340, %v339
    %v352 = vpack.c.b16 %v342, %v341
    %v353 = vpack.c.b16 %v344, %v343
    %v354 = vpack.c.b16 %v346, %v345
    %363 = vmatpush.bf16.msra.mxu0 %v354
    %364 = vmatpush.bf16.msra.mxu0 %v353
    %365 = vmatpush.bf16.msra.mxu0 %v352
    %366 = vmatpush.bf16.msra.mxu0 %v351
    %367 = vmatpush.bf16.msra.mxu0 %v350
    %368 = vmatpush.bf16.msra.mxu0 %v349
    %369 = vmatpush.bf16.msra.mxu0 %v348
    %370 = vmatpush.bf16.msra.mxu0 %v347
    %371 = vmatmul.bf16.gmra.mxu0 %v298
    %v372 = vpop.f32.mrf.mxu0
    %v373 = vadd.f32 0.0, %v372
    %v374 = vpop.f32.mrf.mxu0
    %375 = vdwg.mxu0
    %v376 = vpack.c.bf16 %v373, %v373
    %v377 = vld [vmem:[%s8] sm:$0x1]
    %v379 = vpack.i.b16 %v377, %v377
    %v381 = vperm.slane %v379, 0
    %v382 = vunpack.c.l.bf16 %v376
    %v383 = vunpack.c.l.bf16 %v381
    %v384 = vadd.f32 %v382, %v383
    %v385 = vpack.c.bf16 %v384, %v384
    %v386 = vunpack.c.l.bf16 %v385
    %vm387 = vcmask 64512
    %388 = vst.msk [vmem:[#allocation8] sm:$0xff] %vm387, %v386
    // Predicated region
    $region50: #{tpu_custom_call.1} parent=1 // pred_check
      _
    $region51: #{tpu_custom_call.1} parent=1 // pred_check_branch
      %390 = sbr.rel (0) target = $region53
    $region52: #{tpu_custom_call.1} parent=1 // pred_region
      %392 = vsyncadd [#allocation4], 0
      %s394 = sshll.u32 [#allocation8], 4
      %s395 = int_to_ptr.vmem [resolvable:$true] %s394
      %s396 = sshll.u32 %s9, 4
      %s397 = int_to_ptr.hbm [resolvable:$true] %s396
      %399 = dma.vmem_to_hbm [thread:$0]  %s395, 128, %s397, [#allocation4]
    $region53: #{tpu_custom_call.1} parent=1 // pred_fallthru
      _
    // Predicated region
    $region54: #{tpu_custom_call.1} parent=1 // pred_check
      _
    $region55: #{tpu_custom_call.1} parent=1 // pred_check_branch
      %401 = sbr.rel (0) target = $region57
    $region56: #{tpu_custom_call.1} parent=1 // pred_region
      %403 = dma.done [#allocation4], 128
    $region57: #{tpu_custom_call.1} parent=1 // pred_fallthru
      _
    %404 = vsyncpa [#allocation3], 1
    %405 = vsyncpa [#allocation6], 1
    %406 = vsyncpa [#allocation4], 1

// kernel: tpu_custom_call.1
$region0: #{tpu_custom_call.1}
  #allocation0 [shape = 'u32[]', space=smem, size = 0x4, offset = 0x4, fixed_abs, tag = 'smem constant byte address 0x4 - core index']
  #allocation1 [shape = 'u32[72,128]{1,0:T(1,128)}', space=vmem, size = 0x9000, scoped, tag = 'internal scratch']
  %s0 = inlined_call_operand.hbm [shape: f32[8,16], index: 0, kind: input, shape index: {}]
  %s1 = inlined_call_operand.hbm [shape: bf16[16,128], index: 1, kind: input, shape index: {}]
  %s2 = inlined_call_operand.vmem [shape: bf16[1,128], index: 2, kind: input, shape index: {}]
  %s3 = inlined_call_operand.vmem [shape: bf16[128,128], index: 3, kind: input, shape index: {}]
  %s4 = inlined_call_operand.vmem [shape: bf16[1,128], index: 4, kind: input, shape index: {}]
  %s5 = inlined_call_operand.hbm [shape: bf16[128,128], index: 5, kind: input, shape index: {}]
  %s6 = inlined_call_operand.vmem [shape: bf16[1,128], index: 6, kind: input, shape index: {}]
  %s7 = inlined_call_operand.vmem [shape: bf16[128,8], index: 7, kind: input, shape index: {}]
  %s8 = inlined_call_operand.vmem [shape: bf16[1,8], index: 8, kind: input, shape index: {}]
  %s9 = inlined_call_operand.hbm [shape: f32[8,8], index: 9, kind: output, shape index: {}]
  %s10 = sld [smem:[#allocation0]]
  $region58: #{tpu_custom_call.1} parent=0
    _
  %s12 = ssub.s32 1, %s10
  %s13 = scalar_select 0, %s12, %s10
  $region1: #{tpu_custom_call.1} parent=0
    #allocation2 [shape = 'u8[4096]{0}', space=vmem, size = 0x1000, scoped, tag = 'input window, operand 0, single buffered']
    #allocation3 [shape = 's32[1]{0}', space=sflag, size = 0x4, scoped, tag = 'scoped memory for tpu_custom_call.1']
    #allocation4 [shape = 's32[1]{0}', space=sflag, size = 0x4, scoped, tag = 'scoped memory for tpu_custom_call.1']
    #allocation5 [shape = 'u8[4096]{0}', space=vmem, size = 0x1000, scoped, tag = 'input window, operand 1, single buffered']
    #allocation6 [shape = 's32[1]{0}', space=sflag, size = 0x4, scoped, tag = 'scoped memory for tpu_custom_call.1']
    #allocation7 [shape = 'u8[32768]{0}', space=vmem, size = 0x8000, scoped, tag = 'input window, operand 5, single buffered']
    #allocation8 [shape = 'u8[4096]{0}', space=vmem, size = 0x1000, scoped, tag = 'output window, operand 0, single buffered']
    %14 = vsyncpa [#allocation3], 0
    %15 = vsyncpa [#allocation6], 0
    %16 = vsyncpa [#allocation4], 0
    // Predicated region
    $region2: #{tpu_custom_call.1} parent=1 // pred_check
      _
    $region3: #{tpu_custom_call.1} parent=1 // pred_check_branch
      %18 = sbr.rel (0) target = $region5
    $region4: #{tpu_custom_call.1} parent=1 // pred_region
      %20 = vsyncadd [#allocation3], 0
      %s22 = sshll.u32 %s0, 4
      %s23 = int_to_ptr.hbm [resolvable:$true] %s22
      %s24 = sshll.u32 [#allocation2], 4
      %s25 = int_to_ptr.vmem [resolvable:$true] %s24
      %27 = dma.hbm_to_vmem [thread:$0]  %s23, 128, %s25, [#allocation3]
    $region5: #{tpu_custom_call.1} parent=1 // pred_fallthru
      _
    // Predicated region
    $region6: #{tpu_custom_call.1} parent=1 // pred_check
      _
    $region7: #{tpu_custom_call.1} parent=1 // pred_check_branch
      %29 = sbr.rel (0) target = $region9
    $region8: #{tpu_custom_call.1} parent=1 // pred_region
      %31 = vsyncadd [#allocation6], 0
      %s32 = sshll.u32 %s1, 4
      %s33 = int_to_ptr.hbm [resolvable:$true] %s32
      %s34 = sshll.u32 [#allocation5], 4
      %s35 = int_to_ptr.vmem [resolvable:$true] %s34
      %40 = dma.hbm_to_vmem [thread:$0]  %s33, 128, %s35, [#allocation6], 64, 64, 4
    $region9: #{tpu_custom_call.1} parent=1 // pred_fallthru
      _
    // Predicated region
    $region10: #{tpu_custom_call.1} parent=1 // pred_check
      _
    $region11: #{tpu_custom_call.1} parent=1 // pred_check_branch
      %42 = sbr.rel (0) target = $region13
    $region12: #{tpu_custom_call.1} parent=1 // pred_region
      _
    $region13: #{tpu_custom_call.1} parent=1 // pred_fallthru
      _
    // Predicated region
    $region14: #{tpu_custom_call.1} parent=1 // pred_check
      _
    $region15: #{tpu_custom_call.1} parent=1 // pred_check_branch
      %44 = sbr.rel (0) target = $region17
    $region16: #{tpu_custom_call.1} parent=1 // pred_region
      _
    $region17: #{tpu_custom_call.1} parent=1 // pred_fallthru
      _
    // Predicated region
    $region18: #{tpu_custom_call.1} parent=1 // pred_check
      _
    $region19: #{tpu_custom_call.1} parent=1 // pred_check_branch
      %46 = sbr.rel (0) target = $region21
    $region20: #{tpu_custom_call.1} parent=1 // pred_region
      _
    $region21: #{tpu_custom_call.1} parent=1 // pred_fallthru
      _
    // Predicated region
    $region22: #{tpu_custom_call.1} parent=1 // pred_check
      _
    $region23: #{tpu_custom_call.1} parent=1 // pred_check_branch
      %48 = sbr.rel (0) target = $region25
    $region24: #{tpu_custom_call.1} parent=1 // pred_region
      %50 = vsyncadd [#allocation6], 0
      %s51 = sshll.u32 %s5, 4
      %s52 = int_to_ptr.hbm [resolvable:$true] %s51
      %s53 = sshll.u32 [#allocation7], 4
      %s54 = int_to_ptr.vmem [resolvable:$true] %s53
      %59 = dma.hbm_to_vmem [thread:$0]  %s52, 1024, %s54, [#allocation6], 64, 64, 4
    $region25: #{tpu_custom_call.1} parent=1 // pred_fallthru
      _
    // Predicated region
    $region26: #{tpu_custom_call.1} parent=1 // pred_check
      _
    $region27: #{tpu_custom_call.1} parent=1 // pred_check_branch
      %61 = sbr.rel (0) target = $region29
    $region28: #{tpu_custom_call.1} parent=1 // pred_region
      _
    $region29: #{tpu_custom_call.1} parent=1 // pred_fallthru
      _
    // Predicated region
    $region30: #{tpu_custom_call.1} parent=1 // pred_check
      _
    $region31: #{tpu_custom_call.1} parent=1 // pred_check_branch
      %63 = sbr.rel (0) target = $region33
    $region32: #{tpu_custom_call.1} parent=1 // pred_region
      _
    $region33: #{tpu_custom_call.1} parent=1 // pred_fallthru
      _
    // Predicated region
    $region34: #{tpu_custom_call.1} parent=1 // pred_check
      _
    $region35: #{tpu_custom_call.1} parent=1 // pred_check_branch
      %65 = sbr.rel (0) target = $region37
    $region36: #{tpu_custom_call.1} parent=1 // pred_region
      _
    $region37: #{tpu_custom_call.1} parent=1 // pred_fallthru
      _
    // Predicated region
    $region38: #{tpu_custom_call.1} parent=1 // pred_check
      _
    $region39: #{tpu_custom_call.1} parent=1 // pred_check_branch
      %67 = sbr.rel (0) target = $region41
    $region40: #{tpu_custom_call.1} parent=1 // pred_region
      %69 = dma.done [#allocation3], 128
    $region41: #{tpu_custom_call.1} parent=1 // pred_fallthru
      _
    // Predicated region
    $region42: #{tpu_custom_call.1} parent=1 // pred_check
      _
    $region43: #{tpu_custom_call.1} parent=1 // pred_check_branch
      %71 = sbr.rel (0) target = $region45
    $region44: #{tpu_custom_call.1} parent=1 // pred_region
      %73 = dma.done [#allocation6], 128
    $region45: #{tpu_custom_call.1} parent=1 // pred_fallthru
      _
    // Predicated region
    $region46: #{tpu_custom_call.1} parent=1 // pred_check
      _
    $region47: #{tpu_custom_call.1} parent=1 // pred_check_branch
      %75 = sbr.rel (0) target = $region49
    $region48: #{tpu_custom_call.1} parent=1 // pred_region
      %77 = dma.done [#allocation6], 1024
    $region49: #{tpu_custom_call.1} parent=1 // pred_fallthru
      _
    %v79 = vld [vmem:[#allocation2] sm:$0xff]
    %v80 = vpack.c.bf16 %v79, %v79
    %v81 = vld [vmem:[#allocation5] sm:$0xf]
    %v82 = vld [vmem:[#allocation5 + $0x4] sm:$0xf]
    %v85 = vunpack.c.l.b16 %v81
    %v86 = vunpack.c.l.b16 %v82
    %v87 = vpack.c.b16 %v86, %v85
    %vm89 = vcmask 130048
    %v91 = vsel %vm89, %v80, 0
    %93 = vmatpush.bf16.msra.mxu0 0
    %94 = vmatpush.bf16.msra.mxu0 0
    %95 = vmatpush.bf16.msra.mxu0 0
    %96 = vmatpush.bf16.msra.mxu0 0
    %97 = vmatpush.bf16.msra.mxu0 0
    %98 = vmatpush.bf16.msra.mxu0 0
    %99 = vmatpush.bf16.msra.mxu0 0
    %100 = vmatpush.bf16.msra.mxu0 %v87
    %101 = vmatmul.bf16.gmra.mxu0 %v91
    %v102 = vpop.f32.mrf.mxu0
    %v103 = vadd.f32 0.0, %v102
    %v104 = vpop.f32.mrf.mxu0
    %105 = vdwg.mxu0
    %v106 = vpack.c.bf16 %v103, %v103
    %v107 = vld [vmem:[%s2] sm:$0x1]
    %v109 = vpack.i.b16 %v107, %v107
    %v111 = vperm.slane %v109, 0
    %v112 = vunpack.c.l.bf16 %v106
    %v113 = vunpack.c.l.bf16 %v111
    %v114 = vadd.f32 %v112, %v113
    %v115 = vpack.c.bf16 %v114, %v114
    %v116 = vunpack.c.l.bf16 %v115
    %v117 = vmax.f32 %v116, 0.0
    %v118 = vpack.c.bf16 %v117, %v117
    %v119 = vld [vmem:[%s3] sm:$0xf]
    %v120 = vld [vmem:[%s3 + $0x4] sm:$0xf]
    %v121 = vld [vmem:[%s3 + $0x8] sm:$0xf]
    %v122 = vld [vmem:[%s3 + $0xc] sm:$0xf]
    %v123 = vld [vmem:[%s3 + $0x10] sm:$0xf]
    %v124 = vld [vmem:[%s3 + $0x14] sm:$0xf]
    %v125 = vld [vmem:[%s3 + $0x18] sm:$0xf]
    %v126 = vld [vmem:[%s3 + $0x1c] sm:$0xf]
    %v127 = vld [vmem:[%s3 + $0x20] sm:$0xf]
    %v128 = vld [vmem:[%s3 + $0x24] sm:$0xf]
    %v129 = vld [vmem:[%s3 + $0x28] sm:$0xf]
    %v130 = vld [vmem:[%s3 + $0x2c] sm:$0xf]
    %v131 = vld [vmem:[%s3 + $0x30] sm:$0xf]
    %v132 = vld [vmem:[%s3 + $0x34] sm:$0xf]
    %v133 = vld [vmem:[%s3 + $0x38] sm:$0xf]
    %v134 = vld [vmem:[%s3 + $0x3c] sm:$0xf]
    %v151 = vunpack.c.l.b16 %v119
    %v152 = vunpack.c.l.b16 %v120
    %v153 = vunpack.c.l.b16 %v121
    %v154 = vunpack.c.l.b16 %v122
    %v155 = vunpack.c.l.b16 %v123
    %v156 = vunpack.c.l.b16 %v124
    %v157 = vunpack.c.l.b16 %v125
    %v158 = vunpack.c.l.b16 %v126
    %v159 = vunpack.c.l.b16 %v127
    %v160 = vunpack.c.l.b16 %v128
    %v161 = vunpack.c.l.b16 %v129
    %v162 = vunpack.c.l.b16 %v130
    %v163 = vunpack.c.l.b16 %v131
    %v164 = vunpack.c.l.b16 %v132
    %v165 = vunpack.c.l.b16 %v133
    %v166 = vunpack.c.l.b16 %v134
    %v167 = vpack.c.b16 %v152, %v151
    %v168 = vpack.c.b16 %v154, %v153
    %v169 = vpack.c.b16 %v156, %v155
    %v170 = vpack.c.b16 %v158, %v157
    %v171 = vpack.c.b16 %v160, %v159
    %v172 = vpack.c.b16 %v162, %v161
    %v173 = vpack.c.b16 %v164, %v163
    %v174 = vpack.c.b16 %v166, %v165
    %183 = vmatpush.bf16.msra.mxu0 %v174
    %184 = vmatpush.bf16.msra.mxu0 %v173
    %185 = vmatpush.bf16.msra.mxu0 %v172
    %186 = vmatpush.bf16.msra.mxu0 %v171
    %187 = vmatpush.bf16.msra.mxu0 %v170
    %188 = vmatpush.bf16.msra.mxu0 %v169
    %189 = vmatpush.bf16.msra.mxu0 %v168
    %190 = vmatpush.bf16.msra.mxu0 %v167
    %191 = vmatmul.bf16.gmra.mxu0 %v118
    %v192 = vpop.f32.mrf.mxu0
    %v193 = vadd.f32 0.0, %v192
    %v194 = vpop.f32.mrf.mxu0
    %195 = vdwg.mxu0
    %v196 = vpack.c.bf16 %v193, %v193
    %v197 = vld [vmem:[%s4] sm:$0x1]
    %v199 = vpack.i.b16 %v197, %v197
    %v201 = vperm.slane %v199, 0
    %v202 = vunpack.c.l.bf16 %v196
    %v203 = vunpack.c.l.bf16 %v201
    %v204 = vadd.f32 %v202, %v203
    %v205 = vpack.c.bf16 %v204, %v204
    %v206 = vunpack.c.l.bf16 %v205
    %v207 = vmax.f32 %v206, 0.0
    %v208 = vpack.c.bf16 %v207, %v207
    %v209 = vld [vmem:[#allocation7] sm:$0xf]
    %v210 = vld [vmem:[#allocation7 + $0x4] sm:$0xf]
    %v211 = vld [vmem:[#allocation7 + $0x8] sm:$0xf]
    %v212 = vld [vmem:[#allocation7 + $0xc] sm:$0xf]
    %v213 = vld [vmem:[#allocation7 + $0x10] sm:$0xf]
    %v214 = vld [vmem:[#allocation7 + $0x14] sm:$0xf]
    %v215 = vld [vmem:[#allocation7 + $0x18] sm:$0xf]
    %v216 = vld [vmem:[#allocation7 + $0x1c] sm:$0xf]
    %v217 = vld [vmem:[#allocation7 + $0x20] sm:$0xf]
    %v218 = vld [vmem:[#allocation7 + $0x24] sm:$0xf]
    %v219 = vld [vmem:[#allocation7 + $0x28] sm:$0xf]
    %v220 = vld [vmem:[#allocation7 + $0x2c] sm:$0xf]
    %v221 = vld [vmem:[#allocation7 + $0x30] sm:$0xf]
    %v222 = vld [vmem:[#allocation7 + $0x34] sm:$0xf]
    %v223 = vld [vmem:[#allocation7 + $0x38] sm:$0xf]
    %v224 = vld [vmem:[#allocation7 + $0x3c] sm:$0xf]
    %v241 = vunpack.c.l.b16 %v209
    %v242 = vunpack.c.l.b16 %v210
    %v243 = vunpack.c.l.b16 %v211
    %v244 = vunpack.c.l.b16 %v212
    %v245 = vunpack.c.l.b16 %v213
    %v246 = vunpack.c.l.b16 %v214
    %v247 = vunpack.c.l.b16 %v215
    %v248 = vunpack.c.l.b16 %v216
    %v249 = vunpack.c.l.b16 %v217
    %v250 = vunpack.c.l.b16 %v218
    %v251 = vunpack.c.l.b16 %v219
    %v252 = vunpack.c.l.b16 %v220
    %v253 = vunpack.c.l.b16 %v221
    %v254 = vunpack.c.l.b16 %v222
    %v255 = vunpack.c.l.b16 %v223
    %v256 = vunpack.c.l.b16 %v224
    %v257 = vpack.c.b16 %v242, %v241
    %v258 = vpack.c.b16 %v244, %v243
    %v259 = vpack.c.b16 %v246, %v245
    %v260 = vpack.c.b16 %v248, %v247
    %v261 = vpack.c.b16 %v250, %v249
    %v262 = vpack.c.b16 %v252, %v251
    %v263 = vpack.c.b16 %v254, %v253
    %v264 = vpack.c.b16 %v256, %v255
    %273 = vmatpush.bf16.msra.mxu0 %v264
    %274 = vmatpush.bf16.msra.mxu0 %v263
    %275 = vmatpush.bf16.msra.mxu0 %v262
    %276 = vmatpush.bf16.msra.mxu0 %v261
    %277 = vmatpush.bf16.msra.mxu0 %v260
    %278 = vmatpush.bf16.msra.mxu0 %v259
    %279 = vmatpush.bf16.msra.mxu0 %v258
    %280 = vmatpush.bf16.msra.mxu0 %v257
    %281 = vmatmul.bf16.gmra.mxu0 %v208
    %v282 = vpop.f32.mrf.mxu0
    %v283 = vadd.f32 0.0, %v282
    %v284 = vpop.f32.mrf.mxu0
    %285 = vdwg.mxu0
    %v286 = vpack.c.bf16 %v283, %v283
    %v287 = vld [vmem:[%s6] sm:$0x1]
    %v289 = vpack.i.b16 %v287, %v287
    %v291 = vperm.slane %v289, 0
    %v292 = vunpack.c.l.bf16 %v286
    %v293 = vunpack.c.l.bf16 %v291
    %v294 = vadd.f32 %v292, %v293
    %v295 = vpack.c.bf16 %v294, %v294
    %v296 = vunpack.c.l.bf16 %v295
    %v297 = vmax.f32 %v296, 0.0
    %v298 = vpack.c.bf16 %v297, %v297
    %v299 = vld [vmem:[%s7] sm:$0xf]
    %v300 = vld [vmem:[%s7 + $0x4] sm:$0xf]
    %v301 = vld [vmem:[%s7 + $0x8] sm:$0xf]
    %v302 = vld [vmem:[%s7 + $0xc] sm:$0xf]
    %v303 = vld [vmem:[%s7 + $0x10] sm:$0xf]
    %v304 = vld [vmem:[%s7 + $0x14] sm:$0xf]
    %v305 = vld [vmem:[%s7 + $0x18] sm:$0xf]
    %v306 = vld [vmem:[%s7 + $0x1c] sm:$0xf]
    %v307 = vld [vmem:[%s7 + $0x20] sm:$0xf]
    %v308 = vld [vmem:[%s7 + $0x24] sm:$0xf]
    %v309 = vld [vmem:[%s7 + $0x28] sm:$0xf]
    %v310 = vld [vmem:[%s7 + $0x2c] sm:$0xf]
    %v311 = vld [vmem:[%s7 + $0x30] sm:$0xf]
    %v312 = vld [vmem:[%s7 + $0x34] sm:$0xf]
    %v313 = vld [vmem:[%s7 + $0x38] sm:$0xf]
    %v314 = vld [vmem:[%s7 + $0x3c] sm:$0xf]
    %v331 = vunpack.c.l.b16 %v299
    %v332 = vunpack.c.l.b16 %v300
    %v333 = vunpack.c.l.b16 %v301
    %v334 = vunpack.c.l.b16 %v302
    %v335 = vunpack.c.l.b16 %v303
    %v336 = vunpack.c.l.b16 %v304
    %v337 = vunpack.c.l.b16 %v305
    %v338 = vunpack.c.l.b16 %v306
    %v339 = vunpack.c.l.b16 %v307
    %v340 = vunpack.c.l.b16 %v308
    %v341 = vunpack.c.l.b16 %v309
    %v342 = vunpack.c.l.b16 %v310
    %v343 = vunpack.c.l.b16 %v311
    %v344 = vunpack.c.l.b16 %v312
    %v345 = vunpack.c.l.b16 %v313
    %v346 = vunpack.c.l.b16 %v314
    %v347 = vpack.c.b16 %v332, %v331
    %v348 = vpack.c.b16 %v334, %v333
    %v349 = vpack.c.b16 %v336, %v335
    %v350 = vpack.c.b16 %v338, %v337
    %v351 = vpack.c.b16 %v340, %v339
    %v352 = vpack.c.b16 %v342, %v341
    %v353 = vpack.c.b16 %v344, %v343
    %v354 = vpack.c.b16 %v346, %v345
    %363 = vmatpush.bf16.msra.mxu0 %v354
    %364 = vmatpush.bf16.msra.mxu0 %v353
    %365 = vmatpush.bf16.msra.mxu0 %v352
    %366 = vmatpush.bf16.msra.mxu0 %v351
    %367 = vmatpush.bf16.msra.mxu0 %v350
    %368 = vmatpush.bf16.msra.mxu0 %v349
    %369 = vmatpush.bf16.msra.mxu0 %v348
    %370 = vmatpush.bf16.msra.mxu0 %v347
    %371 = vmatmul.bf16.gmra.mxu0 %v298
    %v372 = vpop.f32.mrf.mxu0
    %v373 = vadd.f32 0.0, %v372
    %v374 = vpop.f32.mrf.mxu0
    %375 = vdwg.mxu0
    %v376 = vpack.c.bf16 %v373, %v373
    %v377 = vld [vmem:[%s8] sm:$0x1]
    %v379 = vpack.i.b16 %v377, %v377
    %v381 = vperm.slane %v379, 0
    %v382 = vunpack.c.l.bf16 %v376
    %v383 = vunpack.c.l.bf16 %v381
    %v384 = vadd.f32 %v382, %v383
    %v385 = vpack.c.bf16 %v384, %v384
    %v386 = vunpack.c.l.bf16 %v385
    %vm387 = vcmask 64512
    %388 = vst.msk [vmem:[#allocation8] sm:$0xff] %vm387, %v386
    // Predicated region
    $region50: #{tpu_custom_call.1} parent=1 // pred_check
      _
    $region51: #{tpu_custom_call.1} parent=1 // pred_check_branch
      %390 = sbr.rel (0) target = $region53
    $region52: #{tpu_custom_call.1} parent=1 // pred_region
      %392 = vsyncadd [#allocation4], 0
      %s394 = sshll.u32 [#allocation8], 4
      %s395 = int_to_ptr.vmem [resolvable:$true] %s394
      %s396 = sshll.u32 %s9, 4
      %s397 = int_to_ptr.hbm [resolvable:$true] %s396
      %399 = dma.vmem_to_hbm [thread:$0]  %s395, 128, %s397, [#allocation4]
    $region53: #{tpu_custom_call.1} parent=1 // pred_fallthru
      _
    // Predicated region
    $region54: #{tpu_custom_call.1} parent=1 // pred_check
      _
    $region55: #{tpu_custom_call.1} parent=1 // pred_check_branch
      %401 = sbr.rel (0) target = $region57
    $region56: #{tpu_custom_call.1} parent=1 // pred_region
      %403 = dma.done [#allocation4], 128
    $region57: #{tpu_custom_call.1} parent=1 // pred_fallthru
      _
    %404 = vsyncpa [#allocation3], 1
    %405 = vsyncpa [#allocation6], 1
    %406 = vsyncpa [#allocation4], 1

</llo_original>
